<compile_context>
chip_gen: v5e
topology: v5e:2x2
jax: 0.10.0
libtpu: 0.0.40
codegen_flags: <defaults>
</compile_context>

<pallas_src>
import functools

import jax
import jax.numpy as jnp
from jax import lax
from jax.experimental import pallas as pl
from jax.experimental.pallas import tpu as pltpu

HP = 128          # lane-padded hidden width
LN_EPS = 1e-5
AGG_EPS = 1e-6


def _round_up(x, m):
    return (x + m - 1) // m * m


def _masked_layernorm(x, gamma, beta, h_true):
    """LayerNorm over the first h_true lanes of a lane-padded tensor."""
    lane = lax.broadcasted_iota(jnp.int32, x.shape, x.ndim - 1)
    mask = (lane < h_true).astype(jnp.float32)
    mu = jnp.sum(x * mask, axis=-1, keepdims=True) / h_true
    diff = (x - mu) * mask
    var = jnp.sum(diff * diff, axis=-1, keepdims=True) / h_true
    return diff * lax.rsqrt(var + LN_EPS) * gamma + beta


# ------------------------------------------------------------------
# Fused 2-layer MLP (node / edge encoder):  y = relu(x@W1 + b1) @ W2 + b2
# ------------------------------------------------------------------
def _mlp2_kernel(x_ref, w1_ref, b1_ref, w2_ref, b2_ref, o_ref):
    x = x_ref[...]
    h = jnp.dot(x.astype(jnp.bfloat16), w1_ref[...],
                preferred_element_type=jnp.float32) + b1_ref[...]
    h = jnp.maximum(h, 0.0)
    o_ref[...] = jnp.dot(h.astype(jnp.bfloat16), w2_ref[...],
                         preferred_element_type=jnp.float32) + b2_ref[...]


def mlp2(x, w1, b1, w2, b2, tile):
    rows, fin = x.shape
    hmid = w1.shape[1]
    hout = w2.shape[1]
    assert rows % tile == 0 and tile % 8 == 0
    return pl.pallas_call(
        _mlp2_kernel,
        out_shape=jax.ShapeDtypeStruct((rows, hout), jnp.float32),
        grid=(rows // tile,),
        in_specs=[
            pl.BlockSpec((tile, fin), lambda i: (i, 0)),
            pl.BlockSpec((fin, hmid), lambda i: (0, 0)),
            pl.BlockSpec((1, hmid), lambda i: (0, 0)),
            pl.BlockSpec((hmid, hout), lambda i: (0, 0)),
            pl.BlockSpec((1, hout), lambda i: (0, 0)),
        ],
        out_specs=pl.BlockSpec((tile, hout), lambda i: (i, 0)),
        compiler_params=pltpu.CompilerParams(
            dimension_semantics=("parallel",)),
    )(x, w1, b1, w2, b2)


# ------------------------------------------------------------------
# GNN layer, phase A: per-node projections, one packed MXU matmul.
# Packed weight columns: [A_src | A_dst | U | V_f | V_b]
# Outputs: P_s[n] = [h@A_src ; h@V_f+b_vf]  (gathered by edge src later)
#          P_d[n] = [h@A_dst ; h@V_b+b_vb]  (gathered by edge dst later)
#          uh     = h@U + b_u
# ------------------------------------------------------------------
def _gnn_node_kernel(h_ref, w_ref, b_ref, ps_ref, pd_ref, uh_ref):
    y = jnp.dot(h_ref[...].astype(jnp.bfloat16), w_ref[...],
                preferred_element_type=jnp.float32) + b_ref[...]
    ps_ref[:, 0, :] = y[:, 0 * HP:1 * HP]
    ps_ref[:, 1, :] = y[:, 3 * HP:4 * HP]
    pd_ref[:, 0, :] = y[:, 1 * HP:2 * HP]
    pd_ref[:, 1, :] = y[:, 4 * HP:5 * HP]
    uh_ref[...] = y[:, 2 * HP:3 * HP]


def gnn_node_proj(h, w_pack, b_pack, tile):
    n = h.shape[0]
    assert n % tile == 0
    return pl.pallas_call(
        _gnn_node_kernel,
        out_shape=(
            jax.ShapeDtypeStruct((n, 2, HP), jnp.float32),
            jax.ShapeDtypeStruct((n, 2, HP), jnp.float32),
            jax.ShapeDtypeStruct((n, HP), jnp.float32),
        ),
        grid=(n // tile,),
        in_specs=[
            pl.BlockSpec((tile, HP), lambda i: (i, 0)),
            pl.BlockSpec((HP, 5 * HP), lambda i: (0, 0)),
            pl.BlockSpec((1, 5 * HP), lambda i: (0, 0)),
        ],
        out_specs=(
            pl.BlockSpec((tile, 2, HP), lambda i: (i, 0, 0)),
            pl.BlockSpec((tile, 2, HP), lambda i: (i, 0, 0)),
            pl.BlockSpec((tile, HP), lambda i: (i, 0)),
        ),
        compiler_params=pltpu.CompilerParams(
            dimension_semantics=("parallel",)),
    )(h, w_pack, b_pack)


# ------------------------------------------------------------------
# GNN layer, phase B: edge-tiled edge update + symmetric gated aggregation.
# Node tensors stay VMEM resident (constant index maps); gathers / scatters
# are per-edge row copies indexed via scalar-prefetched src/dst (SMEM).
# acc rows: [num_fwd, den_fwd, num_bwd, den_bwd]
# ------------------------------------------------------------------
def _gnn_edge_kernel(src_ref, dst_ref,                 # scalar prefetch (SMEM)
                     e_ref, ps_ref, pd_ref, uh_ref, h_ref, ae_ref, vec_ref,
                     eout_ref, hout_ref,
                     acc_ref, gs_ref, gd_ref, msg_ref,
                     *, te, h_true, e_true):
    i = pl.program_id(0)
    n_tiles = pl.num_programs(0)
    base = i * te

    @pl.when(i == 0)
    def _init():
        acc_ref[...] = jnp.zeros_like(acc_ref)

    # ---- gather node projections for this edge tile -------------------------
    def gather_body(t, carry):
        s = src_ref[base + t]
        d = dst_ref[base + t]
        gs_ref[t] = ps_ref[s]
        gd_ref[t] = pd_ref[d]
        return carry
    lax.fori_loop(0, te, gather_body, 0)

    a_src = gs_ref[:, 0, :]
    v_f = gs_ref[:, 1, :]
    a_dst = gd_ref[:, 0, :]
    v_b = gd_ref[:, 1, :]

    b_e = vec_ref[0:1, :]
    ln_e_g = vec_ref[1:2, :]
    ln_e_b = vec_ref[2:3, :]
    ln_h_g = vec_ref[3:4, :]
    ln_h_b = vec_ref[4:5, :]

    # ---- edge update ---------------------------------------------------------
    e_t = e_ref[...]
    e_hat = (a_src + a_dst + b_e
             + jnp.dot(e_t.astype(jnp.bfloat16), ae_ref[...],
                       preferred_element_type=jnp.float32))
    eout_ref[...] = e_t + jnp.maximum(
        _masked_layernorm(e_hat, ln_e_g, ln_e_b, h_true), 0.0)

    sig = jax.nn.sigmoid(e_hat)
    row = lax.broadcasted_iota(jnp.int32, (te, 1), 0)
    valid = ((base + row) < e_true).astype(jnp.float32)   # mask padded edges
    sig = sig * valid

    msg_ref[:, 0, :] = sig * v_f     # forward numerator   -> dst node
    msg_ref[:, 1, :] = sig           # forward denominator -> dst node
    msg_ref[:, 2, :] = sig * v_b     # backward numerator  -> src node
    msg_ref[:, 3, :] = sig           # backward denominator-> src node

    # ---- scatter-accumulate into the per-node accumulator --------------------
    def scatter_body(t, carry):
        s = src_ref[base + t]
        d = dst_ref[base + t]
        acc_ref[d, 0:2, :] = acc_ref[d, 0:2, :] + msg_ref[t, 0:2, :]
        acc_ref[s, 2:4, :] = acc_ref[s, 2:4, :] + msg_ref[t, 2:4, :]
        return carry
    lax.fori_loop(0, te, scatter_body, 0)

    # ---- node update after the last edge tile --------------------------------
    @pl.when(i == n_tiles - 1)
    def _finalize():
        num_f = acc_ref[:, 0, :]
        den_f = acc_ref[:, 1, :]
        num_b = acc_ref[:, 2, :]
        den_b = acc_ref[:, 3, :]
        h_hat = (uh_ref[...]
                 + num_f / (den_f + AGG_EPS)
                 + num_b / (den_b + AGG_EPS))
        hout_ref[...] = h_ref[...] + jnp.maximum(
            _masked_layernorm(h_hat, ln_h_g, ln_h_b, h_true), 0.0)


def gnn_edge_update(src_idx, dst_idx, e, p_s, p_d, uh, h, a_e, vec,
                    *, te, h_true, e_true):
    e_pad = e.shape[0]
    n_pad = h.shape[0]
    assert e_pad % te == 0 and te % 8 == 0
    kernel = functools.partial(_gnn_edge_kernel, te=te, h_true=h_true,
                               e_true=e_true)
    grid_spec = pltpu.PrefetchScalarGridSpec(
        num_scalar_prefetch=2,
        grid=(e_pad // te,),
        in_specs=[
            pl.BlockSpec((te, HP), lambda i, s, d: (i, 0)),           # e tile
            pl.BlockSpec((n_pad, 2, HP), lambda i, s, d: (0, 0, 0)),  # P_s
            pl.BlockSpec((n_pad, 2, HP), lambda i, s, d: (0, 0, 0)),  # P_d
            pl.BlockSpec((n_pad, HP), lambda i, s, d: (0, 0)),        # uh
            pl.BlockSpec((n_pad, HP), lambda i, s, d: (0, 0)),        # h (residual)
            pl.BlockSpec((HP, HP), lambda i, s, d: (0, 0)),           # A_e (bf16)
            pl.BlockSpec((8, HP), lambda i, s, d: (0, 0)),            # packed vectors
        ],
        out_specs=(
            pl.BlockSpec((te, HP), lambda i, s, d: (i, 0)),           # e_out
            pl.BlockSpec((n_pad, HP), lambda i, s, d: (0, 0)),        # h_out
        ),
        scratch_shapes=[
            pltpu.VMEM((n_pad, 4, HP), jnp.float32),   # accumulator
            pltpu.VMEM((te, 2, HP), jnp.float32),      # gathered (src side)
            pltpu.VMEM((te, 2, HP), jnp.float32),      # gathered (dst side)
            pltpu.VMEM((te, 4, HP), jnp.float32),      # staged messages
        ],
    )
    e_out, h_out = pl.pallas_call(
        kernel,
        out_shape=(jax.ShapeDtypeStruct((e_pad, HP), jnp.float32),
                   jax.ShapeDtypeStruct((n_pad, HP), jnp.float32)),
        grid_spec=grid_spec,
        compiler_params=pltpu.CompilerParams(
            dimension_semantics=("arbitrary",)),
    )(src_idx, dst_idx, e, p_s, p_d, uh, h, a_e, vec)
    return h_out, e_out


# ------------------------------------------------------------------
# Score predictor:  score = relu(h_src@W1a + h_dst@W1b + e@W1c + b1) @ W2 + b2
# ------------------------------------------------------------------
def _pred_node_kernel(h_ref, w_ref, pp_ref, *, hs):
    y = jnp.dot(h_ref[...].astype(jnp.bfloat16), w_ref[...],
                preferred_element_type=jnp.float32)
    pp_ref[:, 0, :] = y[:, 0:hs]
    pp_ref[:, 1, :] = y[:, hs:2 * hs]


def pred_node_proj(h, w_pack, tile, hs):
    n = h.shape[0]
    return pl.pallas_call(
        functools.partial(_pred_node_kernel, hs=hs),
        out_shape=jax.ShapeDtypeStruct((n, 2, hs), jnp.float32),
        grid=(n // tile,),
        in_specs=[pl.BlockSpec((tile, HP), lambda i: (i, 0)),
                  pl.BlockSpec((HP, 2 * hs), lambda i: (0, 0))],
        out_specs=pl.BlockSpec((tile, 2, hs), lambda i: (i, 0, 0)),
        compiler_params=pltpu.CompilerParams(
            dimension_semantics=("parallel",)),
    )(h, w_pack)


def _pred_edge_kernel(src_ref, dst_ref,
                      e_ref, pp_ref, w1e_ref, b1_ref, w2_ref, b2_ref,
                      score_ref, gp_ref, *, te):
    i = pl.program_id(0)
    base = i * te

    def gather_body(t, carry):
        s = src_ref[base + t]
        d = dst_ref[base + t]
        gp_ref[t, 0:1, :] = pp_ref[s, 0:1, :]
        gp_ref[t, 1:2, :] = pp_ref[d, 1:2, :]
        return carry
    lax.fori_loop(0, te, gather_body, 0)

    pre = (gp_ref[:, 0, :] + gp_ref[:, 1, :] + b1_ref[...]
           + jnp.dot(e_ref[...].astype(jnp.bfloat16), w1e_ref[...],
                     preferred_element_type=jnp.float32))
    act = jnp.maximum(pre, 0.0)
    score_ref[...] = (jnp.sum(act * w2_ref[...], axis=-1, keepdims=True)
                      + b2_ref[...])


def pred_edge_scores(src_idx, dst_idx, e, pp, w1e, b1, w2_row, b2, *, te):
    e_pad = e.shape[0]
    n_pad = pp.shape[0]
    hs = pp.shape[2]
    grid_spec = pltpu.PrefetchScalarGridSpec(
        num_scalar_prefetch=2,
        grid=(e_pad // te,),
        in_specs=[
            pl.BlockSpec((te, HP), lambda i, s, d: (i, 0)),
            pl.BlockSpec((n_pad, 2, hs), lambda i, s, d: (0, 0, 0)),
            pl.BlockSpec((HP, hs), lambda i, s, d: (0, 0)),
            pl.BlockSpec((1, hs), lambda i, s, d: (0, 0)),
            pl.BlockSpec((1, hs), lambda i, s, d: (0, 0)),
            pl.BlockSpec((1, 1), lambda i, s, d: (0, 0)),
        ],
        out_specs=pl.BlockSpec((te, 1), lambda i, s, d: (i, 0)),
        scratch_shapes=[pltpu.VMEM((te, 2, hs), jnp.float32)],
    )
    return pl.pallas_call(
        functools.partial(_pred_edge_kernel, te=te),
        out_shape=jax.ShapeDtypeStruct((e_pad, 1), jnp.float32),
        grid_spec=grid_spec,
        compiler_params=pltpu.CompilerParams(
            dimension_semantics=("parallel",)),
    )(src_idx, dst_idx, e, pp, w1e, b1, w2_row, b2)


# ------------------------------------------------------------------
# Parameters (raw, PyTorch-Linear style) + packing/padding for the kernels.
# ------------------------------------------------------------------
def init_raw_params(key, node_features, edge_features, hidden_ne, hidden,
                    num_layers, hidden_edge_scores):
    def dense(k, fi, fo):
        k1, k2 = jax.random.split(k)
        s = 1.0 / (fi ** 0.5)
        w = jax.random.uniform(k1, (fi, fo), jnp.float32, -s, s)
        b = jax.random.uniform(k2, (1, fo), jnp.float32, -s, s)
        return w, b

    keys = jax.random.split(key, 7)
    ne_w1, ne_b1 = dense(keys[0], node_features, hidden_ne)
    ne_w2, ne_b2 = dense(keys[1], hidden_ne, hidden)
    ee_w1, ee_b1 = dense(keys[2], edge_features, hidden_ne)
    ee_w2, ee_b2 = dense(keys[3], hidden_ne, hidden)

    layers = []
    for lk in jax.random.split(keys[4], num_layers):
        lks = jax.random.split(lk, 6)
        A_src, _ = dense(lks[0], hidden, hidden)
        A_dst, _ = dense(lks[1], hidden, hidden)
        A_e, b_e = dense(lks[2], hidden, hidden)
        U, b_u = dense(lks[3], hidden, hidden)
        V_f, b_vf = dense(lks[4], hidden, hidden)
        V_b, b_vb = dense(lks[5], hidden, hidden)
        layers.append(dict(A_src=A_src, A_dst=A_dst, A_e=A_e, b_e=b_e,
                           U=U, b_u=b_u, V_f=V_f, b_vf=b_vf, V_b=V_b, b_vb=b_vb,
                           ln_e_g=jnp.ones((1, hidden), jnp.float32),
                           ln_e_b=jnp.zeros((1, hidden), jnp.float32),
                           ln_h_g=jnp.ones((1, hidden), jnp.float32),
                           ln_h_b=jnp.zeros((1, hidden), jnp.float32)))

    W1, b1 = dense(keys[5], 3 * hidden, hidden_edge_scores)
    W2, b2 = dense(keys[6], hidden_edge_scores, 1)
    return dict(node_enc=dict(w1=ne_w1, b1=ne_b1, w2=ne_w2, b2=ne_b2),
                edge_enc=dict(w1=ee_w1, b1=ee_b1, w2=ee_w2, b2=ee_b2),
                gnn=layers,
                pred=dict(W1=W1, b1=b1, W2=W2, b2=b2))


def _pad2(w, rows, cols):
    out = jnp.zeros((rows, cols), jnp.float32)
    return out.at[:w.shape[0], :w.shape[1]].set(w)


def prepare_params(raw, hidden, hidden_edge_scores):
    assert hidden <= HP
    H, hs = hidden, hidden_edge_scores
    p = {"hidden": H}

    def enc(d):
        return dict(w1=d["w1"].astype(jnp.bfloat16), b1=d["b1"],
                    w2=_pad2(d["w2"], d["w2"].shape[0], HP).astype(jnp.bfloat16),
                    b2=_pad2(d["b2"], 1, HP))

    p["node_enc"] = enc(raw["node_enc"])
    p["edge_enc"] = enc(raw["edge_enc"])

    layers = []
    for lp in raw["gnn"]:
        wp = jnp.zeros((HP, 5 * HP), jnp.float32)
        wp = wp.at[:H, 0 * HP:0 * HP + H].set(lp["A_src"])
        wp = wp.at[:H, 1 * HP:1 * HP + H].set(lp["A_dst"])
        wp = wp.at[:H, 2 * HP:2 * HP + H].set(lp["U"])
        wp = wp.at[:H, 3 * HP:3 * HP + H].set(lp["V_f"])
        wp = wp.at[:H, 4 * HP:4 * HP + H].set(lp["V_b"])
        bp = jnp.zeros((1, 5 * HP), jnp.float32)
        bp = bp.at[:, 2 * HP:2 * HP + H].set(lp["b_u"])
        bp = bp.at[:, 3 * HP:3 * HP + H].set(lp["b_vf"])
        bp = bp.at[:, 4 * HP:4 * HP + H].set(lp["b_vb"])
        vec = jnp.zeros((8, HP), jnp.float32)
        vec = vec.at[0, :H].set(lp["b_e"][0])
        vec = vec.at[1, :H].set(lp["ln_e_g"][0])
        vec = vec.at[2, :H].set(lp["ln_e_b"][0])
        vec = vec.at[3, :H].set(lp["ln_h_g"][0])
        vec = vec.at[4, :H].set(lp["ln_h_b"][0])
        layers.append(dict(w_pack=wp.astype(jnp.bfloat16), b_pack=bp,
                           A_e=_pad2(lp["A_e"], HP, HP).astype(jnp.bfloat16),
                           vec=vec))
    p["gnn"] = layers

    pr = raw["pred"]
    W1a, W1b, W1c = pr["W1"][:H], pr["W1"][H:2 * H], pr["W1"][2 * H:3 * H]
    w1_nodes = jnp.zeros((HP, 2 * hs), jnp.float32)
    w1_nodes = w1_nodes.at[:H, 0:hs].set(W1a)
    w1_nodes = w1_nodes.at[:H, hs:2 * hs].set(W1b)
    p["pred"] = dict(hs=hs,
                     w1_nodes=w1_nodes.astype(jnp.bfloat16),
                     w1_edge=_pad2(W1c, HP, hs).astype(jnp.bfloat16),
                     b1=pr["b1"],
                     w2_row=pr["W2"].T,       # [1, hs], kept f32 (VPU matvec)
                     b2=pr["b2"])
    return p


# ------------------------------------------------------------------
# Full model forward.
# ------------------------------------------------------------------
def sym_gated_gcn_forward(params, src, dst, x, e, *, num_nodes,
                          node_tile=8, edge_tile=256):
    # For real graphs pick edge_tile 256-1024 (halve on v7x: 64 MiB VMEM).
    assert node_tile % 8 == 0 and edge_tile % 8 == 0
    h_true = params["hidden"]
    e_true = src.shape[0]
    n_true = num_nodes

    n_pad = _round_up(max(n_true, node_tile), node_tile)
    e_pad = _round_up(max(e_true, edge_tile), edge_tile)

    x_p = jnp.zeros((n_pad, x.shape[1]), jnp.float32).at[:n_true].set(x)
    e_p = jnp.zeros((e_pad, e.shape[1]), jnp.float32).at[:e_true].set(e)
    src_p = jnp.zeros((e_pad,), jnp.int32).at[:e_true].set(src.astype(jnp.int32))
    dst_p = jnp.zeros((e_pad,), jnp.int32).at[:e_true].set(dst.astype(jnp.int32))

    # encoders (fused 2-layer MLPs, one pallas_call each)
    ne = params["node_enc"]
    h = mlp2(x_p, ne["w1"], ne["b1"], ne["w2"], ne["b2"], node_tile)
    ee = params["edge_enc"]
    eh = mlp2(e_p, ee["w1"], ee["b1"], ee["w2"], ee["b2"], edge_tile)

    # SymGatedGCN layers
    for lp in params["gnn"]:
        p_s, p_d, uh = gnn_node_proj(h, lp["w_pack"], lp["b_pack"], node_tile)
        h, eh = gnn_edge_update(src_p, dst_p, eh, p_s, p_d, uh, h,
                                lp["A_e"], lp["vec"],
                                te=edge_tile, h_true=h_true, e_true=e_true)

    # edge score predictor
    pr = params["pred"]
    pp = pred_node_proj(h, pr["w1_nodes"], node_tile, pr["hs"])
    scores = pred_edge_scores(src_p, dst_p, eh, pp, pr["w1_edge"],
                              pr["b1"], pr["w2_row"], pr["b2"], te=edge_tile)
    return scores[:e_true]


# ------------------------------------------------------------------
# Pure-JAX reference (same numerical recipe: bf16 MXU operands, f32 accum).
# ------------------------------------------------------------------
def _ref_dot(a, w):
    return jnp.dot(a.astype(jnp.bfloat16), w.astype(jnp.bfloat16),
                   preferred_element_type=jnp.float32)


def _ref_ln(x, g, b):
    mu = jnp.mean(x, axis=-1, keepdims=True)
    var = jnp.mean((x - mu) ** 2, axis=-1, keepdims=True)
    return (x - mu) * lax.rsqrt(var + LN_EPS) * g + b


def reference_forward(raw, src, dst, x, e, num_nodes):
    ne = raw["node_enc"]
    h = _ref_dot(jnp.maximum(_ref_dot(x, ne["w1"]) + ne["b1"], 0.0),
                 ne["w2"]) + ne["b2"]
    ee = raw["edge_enc"]
    eh = _ref_dot(jnp.maximum(_ref_dot(e, ee["w1"]) + ee["b1"], 0.0),
                  ee["w2"]) + ee["b2"]

    seg = functools.partial(jax.ops.segment_sum, num_segments=num_nodes)
    for lp in raw["gnn"]:
        a_src = _ref_dot(h, lp["A_src"])
        a_dst = _ref_dot(h, lp["A_dst"])
        uh = _ref_dot(h, lp["U"]) + lp["b_u"]
        vf = _ref_dot(h, lp["V_f"]) + lp["b_vf"]
        vb = _ref_dot(h, lp["V_b"]) + lp["b_vb"]
        e_hat = a_src[src] + a_dst[dst] + _ref_dot(eh, lp["A_e"]) + lp["b_e"]
        e_new = eh + jnp.maximum(_ref_ln(e_hat, lp["ln_e_g"], lp["ln_e_b"]), 0.0)
        sig = jax.nn.sigmoid(e_hat)
        num_f = seg(sig * vf[src], dst)
        den_f = seg(sig, dst)
        num_b = seg(sig * vb[dst], src)
        den_b = seg(sig, src)
        h_hat = uh + num_f / (den_f + AGG_EPS) + num_b / (den_b + AGG_EPS)
        h = h + jnp.maximum(_ref_ln(h_hat, lp["ln_h_g"], lp["ln_h_b"]), 0.0)
        eh = e_new

    pr = raw["pred"]
    H = h.shape[1]
    W1a, W1b, W1c = pr["W1"][:H], pr["W1"][H:2 * H], pr["W1"][2 * H:3 * H]
    pre = (_ref_dot(h, W1a)[src] + _ref_dot(h, W1b)[dst]
           + _ref_dot(eh, W1c) + pr["b1"])
    act = jnp.maximum(pre, 0.0)
    return jnp.sum(act * pr["W2"].T, axis=-1, keepdims=True) + pr["b2"]


# ------------------------------------------------------------------
if __name__ == "__main__":
    key = jax.random.PRNGKey(0)
    N, E = 16, 32
    node_features, edge_features = 4, 4
    hidden_ne_features = 16
    hidden_features = 32
    num_layers = 2
    hidden_edge_scores = 64

    k_graph, k_x, k_e, k_p = jax.random.split(key, 4)
    ks, kd = jax.random.split(k_graph)
    src = jax.random.randint(ks, (E,), 0, N, dtype=jnp.int32)
    dst = jax.random.randint(kd, (E,), 0, N, dtype=jnp.int32)
    x = jax.random.normal(k_x, (N, node_features), jnp.float32)
    e = jax.random.normal(k_e, (E, edge_features), jnp.float32)

    raw = init_raw_params(k_p, node_features, edge_features,
                          hidden_ne_features, hidden_features,
                          num_layers, hidden_edge_scores)
    params = prepare_params(raw, hidden_features, hidden_edge_scores)

    # small tiles so the multi-tile / accumulator path is exercised on the toy graph
    scores = sym_gated_gcn_forward(params, src, dst, x, e, num_nodes=N,
                                   node_tile=8, edge_tile=8)
    scores = jax.block_until_ready(scores)
    assert scores.shape == (E, 1) and scores.dtype == jnp.float32
    assert bool(jnp.all(jnp.isfinite(scores)))

    ref = reference_forward(raw, src, dst, x, e, N)
    err = float(jnp.max(jnp.abs(scores - ref)))
    assert err < 5e-2, f"kernel/reference mismatch: max abs err {err}"
    print("KERNEL_OK")
</pallas_src>

<mosaic_0001>
module attributes {stable_mosaic.version = 11 : i64} {
  func.func @_mlp2_kernel(%arg0: i32, %arg1: memref<8x4xf32, #tpu.memory_space<vmem>>, %arg2: memref<4x16xbf16, #tpu.memory_space<vmem>>, %arg3: memref<1x16xf32, #tpu.memory_space<vmem>>, %arg4: memref<16x128xbf16, #tpu.memory_space<vmem>>, %arg5: memref<1x128xf32, #tpu.memory_space<vmem>>, %arg6: memref<8x128xf32, #tpu.memory_space<vmem>>) attributes {dimension_semantics = [#tpu.dimension_semantics<parallel>], iteration_bounds = array<i64: 2>, scalar_prefetch = 0 : i64, scratch_operands = 0 : i64, tpu.core_type = #tpu.core_type<tc>, window_params = [{transform_indices = @transform_0, window_bounds = array<i64: 8, 4>}, {pipeline_mode = #tpu.pipeline_mode<synchronous>, transform_indices = @transform_1, window_bounds = array<i64: 4, 16>}, {pipeline_mode = #tpu.pipeline_mode<synchronous>, transform_indices = @transform_2, window_bounds = array<i64: 1, 16>}, {pipeline_mode = #tpu.pipeline_mode<synchronous>, transform_indices = @transform_3, window_bounds = array<i64: 16, 128>}, {pipeline_mode = #tpu.pipeline_mode<synchronous>, transform_indices = @transform_4, window_bounds = array<i64: 1, 128>}, {transform_indices = @transform_5, window_bounds = array<i64: 8, 128>}]} {
    %c0 = arith.constant 0 : index
    %c0_0 = arith.constant 0 : index
    %0 = vector.load %arg1[%c0, %c0_0] : memref<8x4xf32, #tpu.memory_space<vmem>>, vector<8x4xf32>
    %1 = arith.truncf %0 : vector<8x4xf32> to vector<8x4xbf16>
    %c0_1 = arith.constant 0 : index
    %c0_2 = arith.constant 0 : index
    %2 = vector.load %arg2[%c0_1, %c0_2] : memref<4x16xbf16, #tpu.memory_space<vmem>>, vector<4x16xbf16>
    %cst = arith.constant dense<0.000000e+00> : vector<8x16xf32>
    %3 = tpu.matmul %1, %2, %cst {dimension_numbers = #tpu.dot_dimension_numbers<[1], [0], [0], [1], [0, 0, 1, 1], [], []>} : vector<8x4xbf16>, vector<4x16xbf16>, vector<8x16xf32> -> vector<8x16xf32>
    %c0_3 = arith.constant 0 : index
    %c0_4 = arith.constant 0 : index
    %4 = vector.load %arg3[%c0_3, %c0_4] : memref<1x16xf32, #tpu.memory_space<vmem>>, vector<1x16xf32>
    %5 = vector.broadcast %4 : vector<1x16xf32> to vector<8x16xf32>
    %6 = arith.addf %3, %5 : vector<8x16xf32>
    %cst_5 = arith.constant 0.000000e+00 : f32
    %7 = vector.broadcast %cst_5 : f32 to vector<8x16xf32>
    %8 = arith.maximumf %6, %7 : vector<8x16xf32>
    %9 = arith.truncf %8 : vector<8x16xf32> to vector<8x16xbf16>
    %c0_6 = arith.constant 0 : index
    %c0_7 = arith.constant 0 : index
    %10 = vector.load %arg4[%c0_6, %c0_7] : memref<16x128xbf16, #tpu.memory_space<vmem>>, vector<16x128xbf16>
    %cst_8 = arith.constant dense<0.000000e+00> : vector<8x128xf32>
    %11 = tpu.matmul %9, %10, %cst_8 {dimension_numbers = #tpu.dot_dimension_numbers<[1], [0], [0], [1], [0, 0, 1, 1], [], []>} : vector<8x16xbf16>, vector<16x128xbf16>, vector<8x128xf32> -> vector<8x128xf32>
    %c0_9 = arith.constant 0 : index
    %c0_10 = arith.constant 0 : index
    %12 = vector.load %arg5[%c0_9, %c0_10] : memref<1x128xf32, #tpu.memory_space<vmem>>, vector<1x128xf32>
    %13 = vector.broadcast %12 : vector<1x128xf32> to vector<8x128xf32>
    %14 = arith.addf %11, %13 : vector<8x128xf32>
    %c0_11 = arith.constant 0 : index
    %c0_12 = arith.constant 0 : index
    %15 = vector.load %arg6[%c0_11, %c0_12] : memref<8x128xf32, #tpu.memory_space<vmem>>, vector<8x128xf32>
    tpu.vector_store %arg6[%c0_11, %c0_12], %14 {strides = array<i32>} : memref<8x128xf32, #tpu.memory_space<vmem>>, vector<8x128xf32>,
    return
  }
  func.func @transform_0(%arg0: i32) -> (i32, i32) {
    %c0_i32 = arith.constant 0 : i32
    %c0_i32_0 = arith.constant 0 : i32
    return %arg0, %c0_i32 : i32, i32
  }
  func.func @transform_1(%arg0: i32) -> (i32, i32) {
    %c0_i32 = arith.constant 0 : i32
    %c0_i32_0 = arith.constant 0 : i32
    %c0_i32_1 = arith.constant 0 : i32
    return %c0_i32, %c0_i32_0 : i32, i32
  }
  func.func @transform_2(%arg0: i32) -> (i32, i32) {
    %c0_i32 = arith.constant 0 : i32
    %c0_i32_0 = arith.constant 0 : i32
    %c0_i32_1 = arith.constant 0 : i32
    return %c0_i32, %c0_i32_0 : i32, i32
  }
  func.func @transform_3(%arg0: i32) -> (i32, i32) {
    %c0_i32 = arith.constant 0 : i32
    %c0_i32_0 = arith.constant 0 : i32
    %c0_i32_1 = arith.constant 0 : i32
    return %c0_i32, %c0_i32_0 : i32, i32
  }
  func.func @transform_4(%arg0: i32) -> (i32, i32) {
    %c0_i32 = arith.constant 0 : i32
    %c0_i32_0 = arith.constant 0 : i32
    %c0_i32_1 = arith.constant 0 : i32
    return %c0_i32, %c0_i32_0 : i32, i32
  }
  func.func @transform_5(%arg0: i32) -> (i32, i32) {
    %c0_i32 = arith.constant 0 : i32
    %c0_i32_0 = arith.constant 0 : i32
    return %arg0, %c0_i32 : i32, i32
  }
}

</mosaic_0001>

<llo_original>
// kernel: tpu_custom_call.1
$region0: #{tpu_custom_call.1}
  #allocation0 [shape = 'u32[]', space=smem, size = 0x4, offset = 0x4, fixed_abs, tag = 'smem constant byte address 0x4 - core index']
  #allocation1 [shape = 'u32[72,128]{1,0:T(1,128)}', space=vmem, size = 0x9000, scoped, tag = 'internal scratch']
  %s0 = inlined_call_operand.vmem [shape: f32[16,4], index: 0, kind: input, shape index: {}]
  %s1 = inlined_call_operand.vmem [shape: bf16[4,16], index: 1, kind: input, shape index: {}]
  %s2 = inlined_call_operand.vmem [shape: f32[1,16], index: 2, kind: input, shape index: {}]
  %s3 = inlined_call_operand.vmem [shape: bf16[16,128], index: 3, kind: input, shape index: {}]
  %s4 = inlined_call_operand.vmem [shape: f32[1,128], index: 4, kind: input, shape index: {}]
  %s5 = inlined_call_operand.hbm [shape: f32[16,128], index: 5, kind: output, shape index: {}]
  %s6 = sld [smem:[#allocation0]]
  $region53: #{tpu_custom_call.1} parent=0
    _
  %s8 = ssub.s32 1, %s6
  %s9 = scalar_select 0, %s8, %s6
  $region1: #{tpu_custom_call.1} parent=0
    #allocation2 [shape = 'u8[8192]{0}', space=vmem, size = 0x2000, scoped, tag = 'output window, operand 0']
    #allocation3 [shape = 's32[2]{0}', space=sflag, size = 0x8, scoped, tag = 'scoped memory for tpu_custom_call.1']
    %10 = vsyncpa [#allocation3], 0
    %s11 = scalar_lea.sflag [#allocation3], 1
    %12 = vsyncpa %s11, 0
    loop: start=0, step=1, limit=4
    $region2: #{tpu_custom_call.1} parent=1 // loop_pre_header
      _
    $region3: #{tpu_custom_call.1} parent=1 // loop_header
      %s14 = sphi 0, %s18
      %p15 = scmp.ge.s32.totalorder %s14, 4
      %s24 = sphi 0, %s26
      %s27 = sphi 0, %s24
      %s28 = sphi 0, %s27
      %s44 = sphi 0, %s28
      %s48 = sphi 0, %s48
      %s50 = sphi 0, %s48
      %s51 = sphi 0, %s50
      %s65 = sphi 0, %s51
      %s69 = sphi 0, %s69
      %s71 = sphi 0, %s69
      %s72 = sphi 0, %s71
      %s86 = sphi 0, %s72
      %s90 = sphi 0, %s90
      %s92 = sphi 0, %s90
      %s93 = sphi 0, %s92
      %s107 = sphi 0, %s93
      %s111 = sphi 0, %s111
      %s113 = sphi 0, %s111
      %s114 = sphi 0, %s113
      %s128 = sphi 0, %s114
      %s134 = sphi 0, %s136
      %s137 = sphi 0, %s134
      %s138 = sphi 0, %s137
      %s154 = sphi 0, %s138
    $region4: #{tpu_custom_call.1} parent=1 // loop_header_branch
      %17 = sbr.rel (%p15) target = $region8
    $region5: #{tpu_custom_call.1} parent=1 // loop_body
      %s19 = ssub.s32 %s14, 1
      %s20 = ssub.s32 %s14, 2
      %s21 = sadd.s32 %s14, 1
      %s22 = ssub.s32 %s14, %s21
      %p23 = scmp.eq.s32.totalorder %s22, 0
      %s25 = sadd.s32 %s24, 1
      %s26 = scalar_select %p23, %s24, %s25
      %p29 = pneg %p23
      %p30 = scmp.eq.s32.totalorder %s14, 1
      %p31 = por %p29, %p30
      %p32 = scmp.ne.s32.totalorder %s24, %s27
      %p33 = scmp.eq.s32.totalorder %s14, 0
      %p34 = por %p32, %p33
      %p35 = scmp.ne.s32.totalorder %s24, %s27
      %p36 = scmp.eq.s32.totalorder %s19, 1
      %p37 = por %p35, %p36
      %p38 = scmp.ne.s32.totalorder %s27, %s28
      %p39 = scmp.eq.s32.totalorder %s19, 0
      %p40 = por %p38, %p39
      %p41 = scmp.ne.s32.totalorder %s27, %s28
      %p42 = scmp.eq.s32.totalorder %s20, 1
      %p43 = por %p41, %p42
      %p45 = scmp.ne.s32.totalorder %s28, %s44
      %p46 = scmp.eq.s32.totalorder %s20, 0
      %p47 = por %p45, %p46
      %s49 = sadd.s32 %s48, 1
      %p52 = scmp.eq.s32.totalorder %s14, 1
      %p53 = scmp.ne.s32.totalorder %s48, %s50
      %p54 = scmp.eq.s32.totalorder %s14, 0
      %p55 = por %p53, %p54
      %p56 = scmp.ne.s32.totalorder %s48, %s50
      %p57 = scmp.eq.s32.totalorder %s19, 1
      %p58 = por %p56, %p57
      %p59 = scmp.ne.s32.totalorder %s50, %s51
      %p60 = scmp.eq.s32.totalorder %s19, 0
      %p61 = por %p59, %p60
      %p62 = scmp.ne.s32.totalorder %s50, %s51
      %p63 = scmp.eq.s32.totalorder %s20, 1
      %p64 = por %p62, %p63
      %p66 = scmp.ne.s32.totalorder %s51, %s65
      %p67 = scmp.eq.s32.totalorder %s20, 0
      %p68 = por %p66, %p67
      %s70 = sadd.s32 %s69, 1
      %p73 = scmp.eq.s32.totalorder %s14, 1
      %p74 = scmp.ne.s32.totalorder %s69, %s71
      %p75 = scmp.eq.s32.totalorder %s14, 0
      %p76 = por %p74, %p75
      %p77 = scmp.ne.s32.totalorder %s69, %s71
      %p78 = scmp.eq.s32.totalorder %s19, 1
      %p79 = por %p77, %p78
      %p80 = scmp.ne.s32.totalorder %s71, %s72
      %p81 = scmp.eq.s32.totalorder %s19, 0
      %p82 = por %p80, %p81
      %p83 = scmp.ne.s32.totalorder %s71, %s72
      %p84 = scmp.eq.s32.totalorder %s20, 1
      %p85 = por %p83, %p84
      %p87 = scmp.ne.s32.totalorder %s72, %s86
      %p88 = scmp.eq.s32.totalorder %s20, 0
      %p89 = por %p87, %p88
      %s91 = sadd.s32 %s90, 1
      %p94 = scmp.eq.s32.totalorder %s14, 1
      %p95 = scmp.ne.s32.totalorder %s90, %s92
      %p96 = scmp.eq.s32.totalorder %s14, 0
      %p97 = por %p95, %p96
      %p98 = scmp.ne.s32.totalorder %s90, %s92
      %p99 = scmp.eq.s32.totalorder %s19, 1
      %p100 = por %p98, %p99
      %p101 = scmp.ne.s32.totalorder %s92, %s93
      %p102 = scmp.eq.s32.totalorder %s19, 0
      %p103 = por %p101, %p102
      %p104 = scmp.ne.s32.totalorder %s92, %s93
      %p105 = scmp.eq.s32.totalorder %s20, 1
      %p106 = por %p104, %p105
      %p108 = scmp.ne.s32.totalorder %s93, %s107
      %p109 = scmp.eq.s32.totalorder %s20, 0
      %p110 = por %p108, %p109
      %s112 = sadd.s32 %s111, 1
      %p115 = scmp.eq.s32.totalorder %s14, 1
      %p116 = scmp.ne.s32.totalorder %s111, %s113
      %p117 = scmp.eq.s32.totalorder %s14, 0
      %p118 = por %p116, %p117
      %p119 = scmp.ne.s32.totalorder %s111, %s113
      %p120 = scmp.eq.s32.totalorder %s19, 1
      %p121 = por %p119, %p120
      %p122 = scmp.ne.s32.totalorder %s113, %s114
      %p123 = scmp.eq.s32.totalorder %s19, 0
      %p124 = por %p122, %p123
      %p125 = scmp.ne.s32.totalorder %s113, %s114
      %p126 = scmp.eq.s32.totalorder %s20, 1
      %p127 = por %p125, %p126
      %p129 = scmp.ne.s32.totalorder %s114, %s128
      %p130 = scmp.eq.s32.totalorder %s20, 0
      %p131 = por %p129, %p130
      %s132 = ssub.s32 %s14, %s21
      %p133 = scmp.eq.s32.totalorder %s132, 0
      %s135 = sadd.s32 %s134, 1
      %s136 = scalar_select %p133, %s134, %s135
      %p139 = pneg %p133
      %p140 = scmp.eq.s32.totalorder %s14, 1
      %p141 = por %p139, %p140
      %p142 = scmp.ne.s32.totalorder %s134, %s137
      %p143 = scmp.eq.s32.totalorder %s14, 0
      %p144 = por %p142, %p143
      %p145 = scmp.ne.s32.totalorder %s134, %s137
      %p146 = scmp.eq.s32.totalorder %s19, 1
      %p147 = por %p145, %p146
      %p148 = scmp.ne.s32.totalorder %s137, %s138
      %p149 = scmp.eq.s32.totalorder %s19, 0
      %p150 = por %p148, %p149
      %p151 = scmp.ne.s32.totalorder %s137, %s138
      %p152 = scmp.eq.s32.totalorder %s20, 1
      %p153 = por %p151, %p152
      %p155 = scmp.ne.s32.totalorder %s138, %s154
      %p156 = scmp.eq.s32.totalorder %s20, 0
      %p157 = por %p155, %p156
      %p158 = scmp.le.s32.totalorder 1, %s14
      %p159 = scmp.lt.s32.totalorder %s14, 3
      %p160 = pnand %p158, %p159
      %p161 = pneg %p160
      // Predicated region
      $region9: #{tpu_custom_call.1} parent=5 // pred_check
        _
      $region10: #{tpu_custom_call.1} parent=5 // pred_check_branch
        %163 = sbr.rel (%p160) target = $region12
      $region11: #{tpu_custom_call.1} parent=5 // pred_region
        %s164 = ssub.s32 %s14, 1
        // Predicated region
        $region13: #{tpu_custom_call.1} parent=11 // pred_check
          %p165 = pneg %p61
        $region14: #{tpu_custom_call.1} parent=11 // pred_check_branch
          %167 = sbr.rel (%p165) target = $region16
        $region15: #{tpu_custom_call.1} parent=11 // pred_region
          _
        $region16: #{tpu_custom_call.1} parent=11 // pred_fallthru
          _
        // Predicated region
        $region17: #{tpu_custom_call.1} parent=11 // pred_check
          %p168 = pneg %p82
        $region18: #{tpu_custom_call.1} parent=11 // pred_check_branch
          %170 = sbr.rel (%p168) target = $region20
        $region19: #{tpu_custom_call.1} parent=11 // pred_region
          _
        $region20: #{tpu_custom_call.1} parent=11 // pred_fallthru
          _
        // Predicated region
        $region21: #{tpu_custom_call.1} parent=11 // pred_check
          %p171 = pneg %p103
        $region22: #{tpu_custom_call.1} parent=11 // pred_check_branch
          %173 = sbr.rel (%p171) target = $region24
        $region23: #{tpu_custom_call.1} parent=11 // pred_region
          _
        $region24: #{tpu_custom_call.1} parent=11 // pred_fallthru
          _
        // Predicated region
        $region25: #{tpu_custom_call.1} parent=11 // pred_check
          %p174 = pneg %p124
        $region26: #{tpu_custom_call.1} parent=11 // pred_check_branch
          %176 = sbr.rel (%p174) target = $region28
        $region27: #{tpu_custom_call.1} parent=11 // pred_region
          _
        $region28: #{tpu_custom_call.1} parent=11 // pred_fallthru
          _
      $region12: #{tpu_custom_call.1} parent=5 // pred_fallthru
        _
      %p177 = scmp.lt.s32.totalorder %s14, 2
      // Predicated region
      $region29: #{tpu_custom_call.1} parent=5 // pred_check
        %p178 = pneg %p177
      $region30: #{tpu_custom_call.1} parent=5 // pred_check_branch
        %180 = sbr.rel (%p178) target = $region32
      $region31: #{tpu_custom_call.1} parent=5 // pred_region
        // Predicated region
        $region33: #{tpu_custom_call.1} parent=31 // pred_check
          %p181 = pneg %p34
        $region34: #{tpu_custom_call.1} parent=31 // pred_check_branch
          %183 = sbr.rel (%p181) target = $region36
        $region35: #{tpu_custom_call.1} parent=31 // pred_region
          %p184 = scmp.lt.s32.totalorder %s14, 1
          %s185 = scalar_select %p184, %s14, 1
          %s186 = smul.addr %s185, 8
          %s187 = scalar_lea.vmem %s0, %s186
        $region36: #{tpu_custom_call.1} parent=31 // pred_fallthru
          _
      $region32: #{tpu_custom_call.1} parent=5 // pred_fallthru
        _
      %p188 = scmp.le.s32.totalorder 1, %s14
      %p189 = scmp.lt.s32.totalorder %s14, 3
      %p190 = pnand %p188, %p189
      %p191 = pneg %p190
      // Predicated region
      $region37: #{tpu_custom_call.1} parent=5 // pred_check
        _
      $region38: #{tpu_custom_call.1} parent=5 // pred_check_branch
        %193 = sbr.rel (%p190) target = $region40
      $region39: #{tpu_custom_call.1} parent=5 // pred_region
        %s194 = ssub.s32 %s14, 1
        %p195 = scmp.lt.s32.totalorder %s19, 1
        %s196 = scalar_select %p195, %s19, 1
        %s197 = smul.addr %s196, 8
        %s198 = scalar_lea.vmem %s0, %s197
        %p199 = pneg %p40
        %p200 = pneg %p37
        %p201 = pneg %p61
        %p202 = pneg %p58
        %p203 = pneg %p82
        %p204 = pneg %p79
        %p205 = pneg %p103
        %p206 = pneg %p100
        %p207 = pneg %p124
        %p208 = pneg %p121
        %p209 = pneg %p150
        %p210 = pneg %p147
        %s211 = sand.u32 %s137, 1
        %s212 = scalar_lea.sflag [#allocation3], %s211
        %s213 = sand.u32 %s137, 1
        %s214 = smul.addr %s213, 8
        %s215 = scalar_lea.vmem [#allocation2], %s214
        %p216 = scmp.lt.s32.totalorder %s19, 1
        %s217 = scalar_select %p216, %s19, 1
        %s218 = smul.addr %s217, 8
        %s219 = scalar_lea.vmem %s0, %s218
        %v221 = vld [vmem:[%s219] sm:$0xff]
        %v222 = vpack.c.bf16 %v221, %v221
        %v223 = vld [vmem:[%s1] sm:$0x3]
        %v224 = vld [vmem:[%s2] sm:$0x1]
        %v226 = vperm.slane %v224, 0
        %vm228 = vcmask 31744
        %v230 = vsel %vm228, %v222, 0
        %vm232 = vcmask 1041408
        %v234 = vsel %vm232, %v223, 0
        %236 = vmatpush.bf16.msra.mxu0 0
        %237 = vmatpush.bf16.msra.mxu0 0
        %238 = vmatpush.bf16.msra.mxu0 0
        %239 = vmatpush.bf16.msra.mxu0 0
        %240 = vmatpush.bf16.msra.mxu0 0
        %241 = vmatpush.bf16.msra.mxu0 0
        %242 = vmatpush.bf16.msra.mxu0 0
        %243 = vmatpush.bf16.msra.mxu0 %v234
        %244 = vmatmul.bf16.gmra.mxu0 %v230
        %v245 = vpop.f32.mrf.mxu0
        %v246 = vadd.f32 %v226, %v245
        %v247 = vpop.f32.mrf.mxu0
        %248 = vdwg.mxu0
        %v249 = vmax.f32 %v246, 0.0
        %v250 = vpack.c.bf16 %v249, %v249
        %v251 = vld [vmem:[%s3] sm:$0xf]
        %v252 = vld [vmem:[%s3 + $0x4] sm:$0xf]
        %v253 = vld [vmem:[%s4] sm:$0x1]
        %v255 = vperm.slane %v253, 0
        %v259 = vunpack.c.l.b16 %v251
        %v260 = vunpack.c.l.b16 %v252
        %v261 = vpack.c.b16 %v260, %v259
        %vm263 = vcmask 130048
        %v265 = vsel %vm263, %v250, 0
        %267 = vmatpush.bf16.msra.mxu0 0
        %268 = vmatpush.bf16.msra.mxu0 0
        %269 = vmatpush.bf16.msra.mxu0 0
        %270 = vmatpush.bf16.msra.mxu0 0
        %271 = vmatpush.bf16.msra.mxu0 0
        %272 = vmatpush.bf16.msra.mxu0 0
        %273 = vmatpush.bf16.msra.mxu0 0
        %274 = vmatpush.bf16.msra.mxu0 %v261
        %275 = vmatmul.bf16.gmra.mxu0 %v265
        %v276 = vpop.f32.mrf.mxu0
        %v277 = vadd.f32 %v255, %v276
        %v278 = vpop.f32.mrf.mxu0
        %279 = vdwg.mxu0
        %280 = vst [vmem:[%s215] sm:$0xff] %v277
        %s281 = sand.u32 %s137, 1
        %s282 = scalar_lea.sflag [#allocation3], %s281
        %s283 = sand.u32 %s137, 1
        %s284 = smul.addr %s283, 8
        %s285 = scalar_lea.vmem [#allocation2], %s284
        // Predicated region
        $region41: #{tpu_custom_call.1} parent=39 // pred_check
          %p286 = pneg %p147
        $region42: #{tpu_custom_call.1} parent=39 // pred_check_branch
          %288 = sbr.rel (%p286) target = $region44
        $region43: #{tpu_custom_call.1} parent=39 // pred_region
          %290 = vsyncadd %s282, 0
          %s291 = smul.addr %s19, 8
          %s292 = scalar_lea.hbm %s5, %s291
          %s294 = sshll.u32 %s285, 4
          %s295 = int_to_ptr.vmem [resolvable:$true] %s294
          %s296 = sshll.u32 %s292, 4
          %s297 = int_to_ptr.hbm [resolvable:$true] %s296
          %299 = dma.vmem_to_hbm [thread:$0]  %s295, 128, %s297, %s282
        $region44: #{tpu_custom_call.1} parent=39 // pred_fallthru
          _
      $region40: #{tpu_custom_call.1} parent=5 // pred_fallthru
        _
      %p300 = scmp.le.s32.totalorder 2, %s14
      // Predicated region
      $region45: #{tpu_custom_call.1} parent=5 // pred_check
        %p301 = pneg %p300
      $region46: #{tpu_custom_call.1} parent=5 // pred_check_branch
        %303 = sbr.rel (%p301) target = $region48
      $region47: #{tpu_custom_call.1} parent=5 // pred_region
        %s304 = ssub.s32 %s14, 2
        // Predicated region
        $region49: #{tpu_custom_call.1} parent=47 // pred_check
          %p305 = pneg %p153
        $region50: #{tpu_custom_call.1} parent=47 // pred_check_branch
          %307 = sbr.rel (%p305) target = $region52
        $region51: #{tpu_custom_call.1} parent=47 // pred_region
          %s308 = sand.u32 %s138, 1
          %s309 = scalar_lea.sflag [#allocation3], %s308
          %s310 = sand.u32 %s138, 1
          %s311 = smul.addr %s310, 8
          %s312 = scalar_lea.vmem [#allocation2], %s311
          %314 = dma.done %s309, 128
        $region52: #{tpu_custom_call.1} parent=47 // pred_fallthru
          _
      $region48: #{tpu_custom_call.1} parent=5 // pred_fallthru
        _
    $region6: #{tpu_custom_call.1} parent=1 // loop_footer
      %s18 = sadd.s32 1, %s14
    $region7: #{tpu_custom_call.1} parent=1 // loop_footer_branch
      %13 = sbr.rel target = $region3
    $region8: #{tpu_custom_call.1} parent=1 // loop_exit
      _
    %315 = vsyncpa [#allocation3], 1
    %s316 = scalar_lea.sflag [#allocation3], 1
    %317 = vsyncpa %s316, 1

</llo_original>
